<compile_context>
chip_gen: v7x
topology: tpu7x:2x2x1
jax: 0.10.0
libtpu: 0.0.40
codegen_flags: <defaults>
</compile_context>

<pallas_src>
import jax
import jax.numpy as jnp
from jax.experimental import pallas as pl
from jax.experimental.pallas import tpu as pltpu

# Problem sizes (consistent with the PyTorch module).
HIN_VOCAB_SIZE = 4      # {'<PAD>','<UNK>','<SOS>','<EOS>'}
HIDDEN = 32             # hidden_size
EMB = 256               # embedding_dim
BATCH = 2
SRC_LEN = 8             # encoder sequence length

# ---- Row offsets inside the packed weight slabs (built in prepare_params) ----
# Main slab: 4H = 128 lanes wide.  All segment starts are multiples of 8 so the
# static in-kernel slices never cross an (8, 128) tile boundary.
_R_WE = 0                       # (E, 4H)  emb     -> gates
_R_WH = _R_WE + EMB             # (H, 4H)  h0      -> gates
_R_WC = _R_WH + HIDDEN          # (H, 4H)  context -> gates
_R_B = _R_WC + HIDDEN           # (1, 4H)  fused LSTM bias (8-row padded block)
_R_WOUT = _R_B + 8              # (H, 4H)  out-proj weight (lanes >= V are zero)
_R_BOUT = _R_WOUT + HIDDEN      # (1, 4H)  out-proj bias   (lanes >= V are zero)
_MAIN_ROWS = _R_BOUT + 8        # 368

# Attention slab: 2H = 64 lanes wide.
_A_WLE = 0                      # (H, 2H)  encoder half of attention.l (transposed)
_A_WLH = HIDDEN                 # (H, 2H)  hidden  half of attention.l (transposed)
_A_WO = 2 * HIDDEN              # (1, 2H)  attention.o weight (8-row padded block)
_ATTN_ROWS = _A_WO + 8          # 72


def _decoder_kernel(
    tok_ref,     # (B, 1)           int32 token ids
    enc_ref,     # (B, S, H)        encoder_output
    h0_ref,      # (1, B, H)        decoder hidden state
    c0_ref,      # (1, B, H)        decoder cell state
    embtbl_ref,  # (Vp, E)          embedding table, rows padded to 8
    attn_ref,    # (_ATTN_ROWS, 2H) packed attention weights
    main_ref,    # (_MAIN_ROWS, 4H) packed LSTM + output-projection weights
    logits_ref,  # (B, 1, V)        output logits
    h1_ref,      # (1, B, H)        new hidden
    c1_ref,      # (1, B, H)        new cell
):
  B, S, H = enc_ref.shape
  Vp, E = embtbl_ref.shape
  V = logits_ref.shape[-1]

  enc = enc_ref[...]                       # (B, S, H)
  h0 = h0_ref[0]                           # (B, H)
  c0 = c0_ref[0]                           # (B, H)

  # ---------- Embedding lookup (Dropout(0.5) is identity in eval mode) -------
  # One-hot matmul instead of a dynamic VMEM gather (V is tiny).
  # TODO(synk): training-mode dropout omitted (inference semantics).
  tok = tok_ref[...]                                              # (B, 1) int32
  onehot = (jax.lax.broadcasted_iota(jnp.int32, (B, Vp), 1)
            == tok).astype(jnp.float32)                           # (B, Vp)
  emb = jnp.dot(onehot, embtbl_ref[...],
                preferred_element_type=jnp.float32)               # (B, E)

  # ---------- Attention ----------
  wl_e = attn_ref[_A_WLE:_A_WLE + H, :]                           # (H, 2H)
  wl_h = attn_ref[_A_WLH:_A_WLH + H, :]                           # (H, 2H)
  wo = attn_ref[_A_WO:_A_WO + 1, :]                               # (1, 2H)

  # tanh(cat([enc, h0_rep]) @ W_l^T) split into two pre-transposed matmuls.
  x_enc = jnp.dot(enc.reshape(B * S, H), wl_e,
                  preferred_element_type=jnp.float32).reshape(B, S, 2 * H)
  x_hid = jnp.dot(h0, wl_h, preferred_element_type=jnp.float32)   # (B, 2H)
  x = jnp.tanh(x_enc + x_hid[:, None, :])                         # (B, S, 2H)

  # scores = x @ W_o^T  -> broadcast-mul + lane reduce.
  scores = jnp.sum(x * wo, axis=-1)                               # (B, S)

  # softmax over source positions; EUP approx reciprocal for the normalization.
  m = jnp.max(scores, axis=1, keepdims=True)
  e = jnp.exp(scores - m)
  attn_w = e * pl.reciprocal(jnp.sum(e, axis=1, keepdims=True), approx=True)

  # context = bmm(attn_w[:,None,:], enc) -> (B, H)
  context = jnp.sum(attn_w[:, :, None] * enc, axis=1)             # (B, H)

  # ---------- LSTM single step (gate column order: [i, f, o, g]) -------------
  w_e = main_ref[_R_WE:_R_WE + E, :]                              # (E, 4H)
  w_h = main_ref[_R_WH:_R_WH + H, :]                              # (H, 4H)
  w_c = main_ref[_R_WC:_R_WC + H, :]                              # (H, 4H)
  b = main_ref[_R_B:_R_B + 1, :]                                  # (1, 4H)

  gates = (jnp.dot(emb, w_e, preferred_element_type=jnp.float32)
           + jnp.dot(h0, w_h, preferred_element_type=jnp.float32)
           + jnp.dot(context, w_c, preferred_element_type=jnp.float32)
           + b)                                                   # (B, 4H)

  sig = jax.nn.sigmoid(gates[:, :3 * H])    # one EUP pass: i, f, o
  g_g = jnp.tanh(gates[:, 3 * H:])          # one EUP pass: g
  i_g = sig[:, 0:H]
  f_g = sig[:, H:2 * H]
  o_g = sig[:, 2 * H:3 * H]

  c1 = f_g * c0 + i_g * g_g
  h1 = o_g * jnp.tanh(c1)

  # ---------- Output projection ----------
  wout = main_ref[_R_WOUT:_R_WOUT + H, :]                         # (H, 4H) padded
  bout = main_ref[_R_BOUT:_R_BOUT + 1, :]                         # (1, 4H) padded
  logits = jnp.dot(h1, wout, preferred_element_type=jnp.float32) + bout   # (B, 4H)

  logits_ref[...] = logits[:, :V][:, None, :]                     # (B, 1, V)
  h1_ref[...] = h1[None]                                          # (1, B, H)
  c1_ref[...] = c1[None]                                          # (1, B, H)


def init_params(key, vocab_size=HIN_VOCAB_SIZE, hidden=HIDDEN, emb_dim=EMB):
  ks = jax.random.split(key, 9)
  s = 0.1
  return {
      "embedding": jax.random.normal(ks[0], (vocab_size, emb_dim), jnp.float32) * s,
      "attn_l_w":  jax.random.normal(ks[1], (2 * hidden, 2 * hidden), jnp.float32) * s,
      "attn_o_w":  jax.random.normal(ks[2], (1, 2 * hidden), jnp.float32) * s,
      "lstm_w_ih": jax.random.normal(ks[3], (4 * hidden, emb_dim + hidden), jnp.float32) * s,
      "lstm_w_hh": jax.random.normal(ks[4], (4 * hidden, hidden), jnp.float32) * s,
      "lstm_b_ih": jax.random.normal(ks[5], (4 * hidden,), jnp.float32) * s,
      "lstm_b_hh": jax.random.normal(ks[6], (4 * hidden,), jnp.float32) * s,
      "out_w":     jax.random.normal(ks[7], (vocab_size, hidden), jnp.float32) * s,
      "out_b":     jax.random.normal(ks[8], (vocab_size,), jnp.float32) * s,
  }


def prepare_params(params):
  """One-time weight re-layout: everything packed into two VMEM slabs."""
  hidden = params["lstm_w_hh"].shape[1]
  emb_dim = params["embedding"].shape[1]
  vocab = params["out_b"].shape[0]
  H, E, V = hidden, emb_dim, vocab

  # Reorder LSTM gate columns from PyTorch's [i, f, g, o] to [i, f, o, g] so a
  # single sigmoid covers lanes [0, 3H) and a single tanh covers [3H, 4H).
  perm = jnp.concatenate([jnp.arange(0, 2 * H),
                          jnp.arange(3 * H, 4 * H),
                          jnp.arange(2 * H, 3 * H)])

  w_ih = params["lstm_w_ih"]                                   # (4H, E+H): [emb | ctx]
  w_e = w_ih[:, :E].T[:, perm]                                 # (E, 4H)
  w_c = w_ih[:, E:].T[:, perm]                                 # (H, 4H)
  w_h = params["lstm_w_hh"].T[:, perm]                         # (H, 4H)
  bias = (params["lstm_b_ih"] + params["lstm_b_hh"])[perm]     # (4H,)

  b_blk = jnp.zeros((8, 4 * H), jnp.float32).at[0].set(bias)
  wout_blk = jnp.zeros((H, 4 * H), jnp.float32).at[:, :V].set(params["out_w"].T)
  bout_blk = jnp.zeros((8, 4 * H), jnp.float32).at[0, :V].set(params["out_b"])
  main_slab = jnp.concatenate([w_e, w_h, w_c, b_blk, wout_blk, bout_blk], axis=0)
  assert main_slab.shape == (_MAIN_ROWS, 4 * H)

  wl = params["attn_l_w"]                                      # (2H, 2H): [enc | hid]
  wo_blk = jnp.zeros((8, 2 * H), jnp.float32).at[0].set(params["attn_o_w"][0])
  attn_slab = jnp.concatenate([wl[:, :H].T, wl[:, H:].T, wo_blk], axis=0)
  assert attn_slab.shape == (_ATTN_ROWS, 2 * H)

  # Embedding table padded to 8 rows so the one-hot matmul K-dim is sublane-aligned.
  emb_tbl = jnp.zeros((8, E), jnp.float32).at[:V].set(params["embedding"])

  return {"embedding": emb_tbl, "attn_slab": attn_slab, "main_slab": main_slab}


@jax.jit
def attention_decoder_forward(tokens, encoder_hidden, encoder_cell,
                              encoder_output, prep):
  """Matches AttentionDecoder.forward (eval mode, store_attention=False).

  tokens:          (B, 1) int32
  encoder_hidden:  (1, B, H) float32
  encoder_cell:    (1, B, H) float32
  encoder_output:  (B, S, H) float32
  prep:            output of prepare_params()
  returns: logits (B, 1, V), hidden (1, B, H), cell (1, B, H)
  """
  B, S, H = encoder_output.shape
  V = HIN_VOCAB_SIZE

  vmem = pl.BlockSpec(memory_space=pltpu.MemorySpace.VMEM)

  out_shape = (
      jax.ShapeDtypeStruct((B, 1, V), jnp.float32),
      jax.ShapeDtypeStruct((1, B, H), jnp.float32),
      jax.ShapeDtypeStruct((1, B, H), jnp.float32),
  )

  return pl.pallas_call(
      _decoder_kernel,
      out_shape=out_shape,
      in_specs=[vmem] * 7,
      out_specs=(vmem, vmem, vmem),
  )(tokens, encoder_output, encoder_hidden, encoder_cell,
    prep["embedding"], prep["attn_slab"], prep["main_slab"])


def reference_forward(tokens, encoder_hidden, encoder_cell, encoder_output, params):
  """Pure-JAX reference mirroring the PyTorch forward (eval mode)."""
  B, S, H = encoder_output.shape
  emb = params["embedding"][tokens[:, 0]]                        # (B, E)
  h0 = encoder_hidden[0]                                         # (B, H)
  c0 = encoder_cell[0]

  h_rep = jnp.broadcast_to(h0[:, None, :], (B, S, H))
  combined = jnp.concatenate([encoder_output, h_rep], axis=2)    # (B, S, 2H)
  x = jnp.tanh(combined @ params["attn_l_w"].T)
  scores = (x @ params["attn_o_w"].T)[..., 0]                    # (B, S)
  attn_w = jax.nn.softmax(scores, axis=1)
  context = jnp.einsum("bs,bsh->bh", attn_w, encoder_output)     # (B, H)

  lstm_in = jnp.concatenate([emb, context], axis=1)              # (B, E+H)
  gates = (lstm_in @ params["lstm_w_ih"].T + params["lstm_b_ih"]
           + h0 @ params["lstm_w_hh"].T + params["lstm_b_hh"])
  i_g = jax.nn.sigmoid(gates[:, 0 * H:1 * H])
  f_g = jax.nn.sigmoid(gates[:, 1 * H:2 * H])
  g_g = jnp.tanh(gates[:, 2 * H:3 * H])
  o_g = jax.nn.sigmoid(gates[:, 3 * H:4 * H])
  c1 = f_g * c0 + i_g * g_g
  h1 = o_g * jnp.tanh(c1)
  logits = h1 @ params["out_w"].T + params["out_b"]
  return logits[:, None, :], h1[None], c1[None]


if __name__ == "__main__":
  key = jax.random.PRNGKey(0)
  k_par, k_tok, k_h, k_c, k_enc = jax.random.split(key, 5)

  params = init_params(k_par)
  prepared = prepare_params(params)   # one-time weight re-layout

  tokens = jax.random.randint(k_tok, (BATCH, 1), 0, HIN_VOCAB_SIZE, dtype=jnp.int32)
  encoder_hidden = jax.random.normal(k_h, (1, BATCH, HIDDEN), jnp.float32)
  encoder_cell = jax.random.normal(k_c, (1, BATCH, HIDDEN), jnp.float32)
  encoder_output = jax.random.normal(k_enc, (BATCH, SRC_LEN, HIDDEN), jnp.float32)

  logits, h1, c1 = attention_decoder_forward(
      tokens, encoder_hidden, encoder_cell, encoder_output, prepared)
  jax.block_until_ready((logits, h1, c1))

  ref_logits, ref_h1, ref_c1 = reference_forward(
      tokens, encoder_hidden, encoder_cell, encoder_output, params)

  assert logits.shape == (BATCH, 1, HIN_VOCAB_SIZE)
  assert h1.shape == (1, BATCH, HIDDEN) and c1.shape == (1, BATCH, HIDDEN)
  assert jnp.allclose(logits, ref_logits, rtol=5e-3, atol=5e-3)
  assert jnp.allclose(h1, ref_h1, rtol=5e-3, atol=5e-3)
  assert jnp.allclose(c1, ref_c1, rtol=5e-3, atol=5e-3)

  print("KERNEL_OK")
</pallas_src>

<mosaic_0001>
module attributes {stable_mosaic.version = 11 : i64} {
  func.func @_decoder_kernel(%arg0: memref<2x1xi32, #tpu.memory_space<vmem>>, %arg1: memref<2x8x32xf32, #tpu.memory_space<vmem>>, %arg2: memref<1x2x32xf32, #tpu.memory_space<vmem>>, %arg3: memref<1x2x32xf32, #tpu.memory_space<vmem>>, %arg4: memref<8x256xf32, #tpu.memory_space<vmem>>, %arg5: memref<72x64xf32, #tpu.memory_space<vmem>>, %arg6: memref<368x128xf32, #tpu.memory_space<vmem>>, %arg7: memref<2x1x4xf32, #tpu.memory_space<vmem>>, %arg8: memref<1x2x32xf32, #tpu.memory_space<vmem>>, %arg9: memref<1x2x32xf32, #tpu.memory_space<vmem>>) attributes {dimension_semantics = [], scalar_prefetch = 0 : i64, scratch_operands = 0 : i64, tpu.core_type = #tpu.core_type<tc>} {
    %c0 = arith.constant 0 : index
    %c0_0 = arith.constant 0 : index
    %c0_1 = arith.constant 0 : index
    %0 = vector.load %arg1[%c0, %c0_0, %c0_1] : memref<2x8x32xf32, #tpu.memory_space<vmem>>, vector<2x8x32xf32>
    %c0_2 = arith.constant 0 : index
    %c0_3 = arith.constant 0 : index
    %c0_4 = arith.constant 0 : index
    %1 = vector.load %arg2[%c0_2, %c0_3, %c0_4] : memref<1x2x32xf32, #tpu.memory_space<vmem>>, vector<1x2x32xf32>
    %2 = vector.shape_cast %1 : vector<1x2x32xf32> to vector<2x32xf32>
    %c0_5 = arith.constant 0 : index
    %c0_6 = arith.constant 0 : index
    %c0_7 = arith.constant 0 : index
    %3 = vector.load %arg3[%c0_5, %c0_6, %c0_7] : memref<1x2x32xf32, #tpu.memory_space<vmem>>, vector<1x2x32xf32>
    %4 = vector.shape_cast %3 : vector<1x2x32xf32> to vector<2x32xf32>
    %c0_8 = arith.constant 0 : index
    %c0_9 = arith.constant 0 : index
    %5 = vector.load %arg0[%c0_8, %c0_9] : memref<2x1xi32, #tpu.memory_space<vmem>>, vector<2x1xi32>
    %6 = tpu.iota {dimensions = array<i32: 1>} : vector<2x8xi32>
    %7 = vector.broadcast %5 : vector<2x1xi32> to vector<2x8xi32>
    %8 = arith.cmpi eq, %6, %7 : vector<2x8xi32>
    %9 = arith.extui %8 : vector<2x8xi1> to vector<2x8xi32>
    %10 = arith.sitofp %9 : vector<2x8xi32> to vector<2x8xf32>
    %c0_10 = arith.constant 0 : index
    %c0_11 = arith.constant 0 : index
    %11 = vector.load %arg4[%c0_10, %c0_11] : memref<8x256xf32, #tpu.memory_space<vmem>>, vector<8x256xf32>
    %cst = arith.constant dense<0.000000e+00> : vector<2x256xf32>
    %12 = tpu.matmul %10, %11, %cst {dimension_numbers = #tpu.dot_dimension_numbers<[1], [0], [0], [1], [0, 0, 1, 1], [], []>} : vector<2x8xf32>, vector<8x256xf32>, vector<2x256xf32> -> vector<2x256xf32>
    %c0_12 = arith.constant 0 : index
    %c0_13 = arith.constant 0 : index
    %13 = vector.load %arg5[%c0_12, %c0_13] : memref<72x64xf32, #tpu.memory_space<vmem>>, vector<32x64xf32>
    %c32 = arith.constant 32 : index
    %c0_14 = arith.constant 0 : index
    %14 = vector.load %arg5[%c32, %c0_14] : memref<72x64xf32, #tpu.memory_space<vmem>>, vector<32x64xf32>
    %c64 = arith.constant 64 : index
    %c0_15 = arith.constant 0 : index
    %15 = vector.load %arg5[%c64, %c0_15] : memref<72x64xf32, #tpu.memory_space<vmem>>, vector<1x64xf32>
    %16 = vector.shape_cast %0 : vector<2x8x32xf32> to vector<16x32xf32>
    %cst_16 = arith.constant dense<0.000000e+00> : vector<16x64xf32>
    %17 = tpu.matmul %16, %13, %cst_16 {dimension_numbers = #tpu.dot_dimension_numbers<[1], [0], [0], [1], [0, 0, 1, 1], [], []>} : vector<16x32xf32>, vector<32x64xf32>, vector<16x64xf32> -> vector<16x64xf32>
    %18 = vector.shape_cast %17 : vector<16x64xf32> to vector<2x8x64xf32>
    %cst_17 = arith.constant dense<0.000000e+00> : vector<2x64xf32>
    %19 = tpu.matmul %2, %14, %cst_17 {dimension_numbers = #tpu.dot_dimension_numbers<[1], [0], [0], [1], [0, 0, 1, 1], [], []>} : vector<2x32xf32>, vector<32x64xf32>, vector<2x64xf32> -> vector<2x64xf32>
    %20 = vector.shape_cast %19 : vector<2x64xf32> to vector<2x1x64xf32>
    %21 = vector.broadcast %20 : vector<2x1x64xf32> to vector<2x8x64xf32>
    %22 = arith.addf %18, %21 : vector<2x8x64xf32>
    %23 = math.tanh %22 : vector<2x8x64xf32>
    %24 = vector.shape_cast %15 : vector<1x64xf32> to vector<1x1x64xf32>
    %25 = vector.broadcast %24 : vector<1x1x64xf32> to vector<2x8x64xf32>
    %26 = arith.mulf %23, %25 : vector<2x8x64xf32>
    %cst_18 = arith.constant dense<0.000000e+00> : vector<2x8xf32>
    %27 = vector.multi_reduction <add>, %26, %cst_18 [2] : vector<2x8x64xf32> to vector<2x8xf32>
    %cst_19 = arith.constant dense<0xFF800000> : vector<2xf32>
    %28 = vector.multi_reduction <maximumf>, %27, %cst_19 [1] : vector<2x8xf32> to vector<2xf32>
    %29 = vector.shape_cast %28 : vector<2xf32> to vector<2x1xf32>
    %30 = vector.broadcast %29 : vector<2x1xf32> to vector<2x8xf32>
    %31 = arith.subf %27, %30 : vector<2x8xf32>
    %32 = math.exp %31 : vector<2x8xf32>
    %cst_20 = arith.constant dense<0.000000e+00> : vector<2xf32>
    %33 = vector.multi_reduction <add>, %32, %cst_20 [1] : vector<2x8xf32> to vector<2xf32>
    %34 = vector.shape_cast %33 : vector<2xf32> to vector<2x1xf32>
    %35 = tpu.reciprocal %34 {approx = true} : vector<2x1xf32> -> vector<2x1xf32>
    %36 = vector.broadcast %35 : vector<2x1xf32> to vector<2x8xf32>
    %37 = arith.mulf %32, %36 : vector<2x8xf32>
    %38 = vector.shape_cast %37 : vector<2x8xf32> to vector<2x8x1xf32>
    %39 = vector.broadcast %38 : vector<2x8x1xf32> to vector<2x8x32xf32>
    %40 = arith.mulf %39, %0 : vector<2x8x32xf32>
    %cst_21 = arith.constant dense<0.000000e+00> : vector<2x32xf32>
    %41 = vector.multi_reduction <add>, %40, %cst_21 [1] : vector<2x8x32xf32> to vector<2x32xf32>
    %c0_22 = arith.constant 0 : index
    %c0_23 = arith.constant 0 : index
    %42 = vector.load %arg6[%c0_22, %c0_23] : memref<368x128xf32, #tpu.memory_space<vmem>>, vector<256x128xf32>
    %c256 = arith.constant 256 : index
    %c0_24 = arith.constant 0 : index
    %43 = vector.load %arg6[%c256, %c0_24] : memref<368x128xf32, #tpu.memory_space<vmem>>, vector<32x128xf32>
    %c288 = arith.constant 288 : index
    %c0_25 = arith.constant 0 : index
    %44 = vector.load %arg6[%c288, %c0_25] : memref<368x128xf32, #tpu.memory_space<vmem>>, vector<32x128xf32>
    %c320 = arith.constant 320 : index
    %c0_26 = arith.constant 0 : index
    %45 = vector.load %arg6[%c320, %c0_26] : memref<368x128xf32, #tpu.memory_space<vmem>>, vector<1x128xf32>
    %cst_27 = arith.constant dense<0.000000e+00> : vector<2x128xf32>
    %46 = tpu.matmul %12, %42, %cst_27 {dimension_numbers = #tpu.dot_dimension_numbers<[1], [0], [0], [1], [0, 0, 1, 1], [], []>} : vector<2x256xf32>, vector<256x128xf32>, vector<2x128xf32> -> vector<2x128xf32>
    %cst_28 = arith.constant dense<0.000000e+00> : vector<2x128xf32>
    %47 = tpu.matmul %2, %43, %cst_28 {dimension_numbers = #tpu.dot_dimension_numbers<[1], [0], [0], [1], [0, 0, 1, 1], [], []>} : vector<2x32xf32>, vector<32x128xf32>, vector<2x128xf32> -> vector<2x128xf32>
    %48 = arith.addf %46, %47 : vector<2x128xf32>
    %cst_29 = arith.constant dense<0.000000e+00> : vector<2x128xf32>
    %49 = tpu.matmul %41, %44, %cst_29 {dimension_numbers = #tpu.dot_dimension_numbers<[1], [0], [0], [1], [0, 0, 1, 1], [], []>} : vector<2x32xf32>, vector<32x128xf32>, vector<2x128xf32> -> vector<2x128xf32>
    %50 = arith.addf %48, %49 : vector<2x128xf32>
    %51 = vector.broadcast %45 : vector<1x128xf32> to vector<2x128xf32>
    %52 = arith.addf %50, %51 : vector<2x128xf32>
    %53 = vector.extract_strided_slice %52 {offsets = [0, 0], sizes = [2, 96], strides = [1, 1]} : vector<2x128xf32> to vector<2x96xf32>
    %54 = arith.negf %53 : vector<2x96xf32>
    %55 = math.exp %54 : vector<2x96xf32>
    %cst_30 = arith.constant 1.000000e+00 : f32
    %56 = vector.broadcast %cst_30 : f32 to vector<2x96xf32>
    %57 = arith.addf %56, %55 : vector<2x96xf32>
    %58 = arith.divf %56, %57 : vector<2x96xf32>
    %59 = vector.extract_strided_slice %52 {offsets = [0, 96], sizes = [2, 32], strides = [1, 1]} : vector<2x128xf32> to vector<2x32xf32>
    %60 = math.tanh %59 : vector<2x32xf32>
    %61 = vector.extract_strided_slice %58 {offsets = [0, 0], sizes = [2, 32], strides = [1, 1]} : vector<2x96xf32> to vector<2x32xf32>
    %62 = vector.extract_strided_slice %58 {offsets = [0, 32], sizes = [2, 32], strides = [1, 1]} : vector<2x96xf32> to vector<2x32xf32>
    %63 = vector.extract_strided_slice %58 {offsets = [0, 64], sizes = [2, 32], strides = [1, 1]} : vector<2x96xf32> to vector<2x32xf32>
    %64 = arith.mulf %62, %4 : vector<2x32xf32>
    %65 = arith.mulf %61, %60 : vector<2x32xf32>
    %66 = arith.addf %64, %65 : vector<2x32xf32>
    %67 = math.tanh %66 : vector<2x32xf32>
    %68 = arith.mulf %63, %67 : vector<2x32xf32>
    %c328 = arith.constant 328 : index
    %c0_31 = arith.constant 0 : index
    %69 = vector.load %arg6[%c328, %c0_31] : memref<368x128xf32, #tpu.memory_space<vmem>>, vector<32x128xf32>
    %c360 = arith.constant 360 : index
    %c0_32 = arith.constant 0 : index
    %70 = vector.load %arg6[%c360, %c0_32] : memref<368x128xf32, #tpu.memory_space<vmem>>, vector<1x128xf32>
    %cst_33 = arith.constant dense<0.000000e+00> : vector<2x128xf32>
    %71 = tpu.matmul %68, %69, %cst_33 {dimension_numbers = #tpu.dot_dimension_numbers<[1], [0], [0], [1], [0, 0, 1, 1], [], []>} : vector<2x32xf32>, vector<32x128xf32>, vector<2x128xf32> -> vector<2x128xf32>
    %72 = vector.broadcast %70 : vector<1x128xf32> to vector<2x128xf32>
    %73 = arith.addf %71, %72 : vector<2x128xf32>
    %74 = vector.extract_strided_slice %73 {offsets = [0, 0], sizes = [2, 4], strides = [1, 1]} : vector<2x128xf32> to vector<2x4xf32>
    %75 = vector.shape_cast %74 : vector<2x4xf32> to vector<2x1x4xf32>
    %c0_34 = arith.constant 0 : index
    %c0_35 = arith.constant 0 : index
    %c0_36 = arith.constant 0 : index
    %76 = vector.load %arg7[%c0_34, %c0_35, %c0_36] : memref<2x1x4xf32, #tpu.memory_space<vmem>>, vector<2x1x4xf32>
    tpu.vector_store %arg7[%c0_34, %c0_35, %c0_36], %75 {strides = array<i32>} : memref<2x1x4xf32, #tpu.memory_space<vmem>>, vector<2x1x4xf32>,
    %77 = vector.shape_cast %68 : vector<2x32xf32> to vector<1x2x32xf32>
    %c0_37 = arith.constant 0 : index
    %c0_38 = arith.constant 0 : index
    %c0_39 = arith.constant 0 : index
    %78 = vector.load %arg8[%c0_37, %c0_38, %c0_39] : memref<1x2x32xf32, #tpu.memory_space<vmem>>, vector<1x2x32xf32>
    tpu.vector_store %arg8[%c0_37, %c0_38, %c0_39], %77 {strides = array<i32>} : memref<1x2x32xf32, #tpu.memory_space<vmem>>, vector<1x2x32xf32>,
    %79 = vector.shape_cast %66 : vector<2x32xf32> to vector<1x2x32xf32>
    %c0_40 = arith.constant 0 : index
    %c0_41 = arith.constant 0 : index
    %c0_42 = arith.constant 0 : index
    %80 = vector.load %arg9[%c0_40, %c0_41, %c0_42] : memref<1x2x32xf32, #tpu.memory_space<vmem>>, vector<1x2x32xf32>
    tpu.vector_store %arg9[%c0_40, %c0_41, %c0_42], %79 {strides = array<i32>} : memref<1x2x32xf32, #tpu.memory_space<vmem>>, vector<1x2x32xf32>,
    return
  }
}

</mosaic_0001>

<llo_original>
// kernel: attention_decoder_forward.1
$region0: #{attention_decoder_forward.1}
  #allocation0 [shape = 'u32[]', space=smem, size = 0x4, offset = 0x4, fixed_abs, tag = 'smem constant byte address 0x4 - core index']
  #allocation1 [shape = 'u32[144,128]{1,0:T(1,128)}', space=vmem, size = 0x12000, scoped, tag = 'internal scratch']
  %s0 = inlined_call_operand.vmem [shape: s32[2,1], index: 0, kind: input, shape index: {}]
  %s1 = inlined_call_operand.vmem [shape: f32[2,8,32], index: 1, kind: input, shape index: {}]
  %s2 = inlined_call_operand.vmem [shape: f32[1,2,32], index: 2, kind: input, shape index: {}]
  %s3 = inlined_call_operand.vmem [shape: f32[1,2,32], index: 3, kind: input, shape index: {}]
  %s4 = inlined_call_operand.vmem [shape: f32[8,256], index: 4, kind: input, shape index: {}]
  %s5 = inlined_call_operand.vmem [shape: f32[72,64], index: 5, kind: input, shape index: {}]
  %s6 = inlined_call_operand.hbm [shape: f32[368,128], index: 6, kind: input, shape index: {}]
  %s7 = inlined_call_operand.hbm [shape: f32[2,1,4], index: 7, kind: output, shape index: {0}]
  %s8 = inlined_call_operand.hbm [shape: f32[1,2,32], index: 8, kind: output, shape index: {1}]
  %s9 = inlined_call_operand.hbm [shape: f32[1,2,32], index: 9, kind: output, shape index: {2}]
  %10 = xla_tuple %s7, %s8, %s9
  %s11 = sld [smem:[#allocation0]]
  $region58: #{attention_decoder_forward.1} parent=0
    _
  %s13 = ssub.s32 1, %s11
  %s14 = scalar_select 0, %s13, %s11
  $region1: #{attention_decoder_forward.1} parent=0
    #allocation2 [shape = 'u8[188416]{0}', space=vmem, size = 0x2e000, scoped, tag = 'input window, operand 6, single buffered']
    #allocation3 [shape = 's32[1]{0}', space=sflag, size = 0x4, scoped, tag = 'scoped memory for attention_decoder_forward.1']
    #allocation4 [shape = 's32[1]{0}', space=sflag, size = 0x4, scoped, tag = 'scoped memory for attention_decoder_forward.1']
    #allocation5 [shape = 'u8[1024]{0}', space=vmem, size = 0x400, scoped, tag = 'output window, operand 0, single buffered']
    #allocation6 [shape = 'u8[1024]{0}', space=vmem, size = 0x400, scoped, tag = 'output window, operand 1, single buffered']
    #allocation7 [shape = 's32[1]{0}', space=sflag, size = 0x4, scoped, tag = 'scoped memory for attention_decoder_forward.1']
    #allocation8 [shape = 'u8[1024]{0}', space=vmem, size = 0x400, scoped, tag = 'output window, operand 2, single buffered']
    %15 = vsyncpa [#allocation3], 0
    %16 = vsyncpa [#allocation4], 0
    %17 = vsyncpa [#allocation7], 0
    // Predicated region
    $region2: #{attention_decoder_forward.1} parent=1 // pred_check
      _
    $region3: #{attention_decoder_forward.1} parent=1 // pred_check_branch
      %19 = sbr.rel (0) target = $region5
    $region4: #{attention_decoder_forward.1} parent=1 // pred_region
      _
    $region5: #{attention_decoder_forward.1} parent=1 // pred_fallthru
      _
    // Predicated region
    $region6: #{attention_decoder_forward.1} parent=1 // pred_check
      _
    $region7: #{attention_decoder_forward.1} parent=1 // pred_check_branch
      %21 = sbr.rel (0) target = $region9
    $region8: #{attention_decoder_forward.1} parent=1 // pred_region
      _
    $region9: #{attention_decoder_forward.1} parent=1 // pred_fallthru
      _
    // Predicated region
    $region10: #{attention_decoder_forward.1} parent=1 // pred_check
      _
    $region11: #{attention_decoder_forward.1} parent=1 // pred_check_branch
      %23 = sbr.rel (0) target = $region13
    $region12: #{attention_decoder_forward.1} parent=1 // pred_region
      _
    $region13: #{attention_decoder_forward.1} parent=1 // pred_fallthru
      _
    // Predicated region
    $region14: #{attention_decoder_forward.1} parent=1 // pred_check
      _
    $region15: #{attention_decoder_forward.1} parent=1 // pred_check_branch
      %25 = sbr.rel (0) target = $region17
    $region16: #{attention_decoder_forward.1} parent=1 // pred_region
      _
    $region17: #{attention_decoder_forward.1} parent=1 // pred_fallthru
      _
    // Predicated region
    $region18: #{attention_decoder_forward.1} parent=1 // pred_check
      _
    $region19: #{attention_decoder_forward.1} parent=1 // pred_check_branch
      %27 = sbr.rel (0) target = $region21
    $region20: #{attention_decoder_forward.1} parent=1 // pred_region
      _
    $region21: #{attention_decoder_forward.1} parent=1 // pred_fallthru
      _
    // Predicated region
    $region22: #{attention_decoder_forward.1} parent=1 // pred_check
      _
    $region23: #{attention_decoder_forward.1} parent=1 // pred_check_branch
      %29 = sbr.rel (0) target = $region25
    $region24: #{attention_decoder_forward.1} parent=1 // pred_region
      _
    $region25: #{attention_decoder_forward.1} parent=1 // pred_fallthru
      _
    // Predicated region
    $region26: #{attention_decoder_forward.1} parent=1 // pred_check
      _
    $region27: #{attention_decoder_forward.1} parent=1 // pred_check_branch
      %31 = sbr.rel (0) target = $region29
    $region28: #{attention_decoder_forward.1} parent=1 // pred_region
      %s33 = ssub.s32 5888, 5888
      %34 = vsyncadd [#allocation3], %s33
      %s35 = sshll.u32 [#allocation2], 4
      %s36 = int_to_ptr.vmem [resolvable:$true] %s35
      %41 = dma.hbm_to_vmem [thread:$0]  %s6, 5888, %s36, [#allocation3], 128, 128, 8
    $region29: #{attention_decoder_forward.1} parent=1 // pred_fallthru
      _
    // Predicated region
    $region30: #{attention_decoder_forward.1} parent=1 // pred_check
      _
    $region31: #{attention_decoder_forward.1} parent=1 // pred_check_branch
      %43 = sbr.rel (0) target = $region33
    $region32: #{attention_decoder_forward.1} parent=1 // pred_region
      %44 = dma.done [#allocation3], 5888
    $region33: #{attention_decoder_forward.1} parent=1 // pred_fallthru
      _
    %v45 = vld [vmem:[%s1] sm:$0xff]
    %v46 = vld [vmem:[%s1 + $0x8] sm:$0xff]
    %v47 = vld [vmem:[%s2] sm:$0x3]
    %v48 = vld [vmem:[%s3] sm:$0x3]
    %v49 = vld [vmem:[%s0] sm:$0x3]
    %v50 = vlaneseq
    %v51 = vand.u32 %v50, 127
    %52 = vset.pattern.permute.xlu0 0
    %53 = vperm.xlu0 %52, %v49
    %v54 = vpop.permute.xlu0 %53
    %vm55 = vcmp.eq.s32.totalorder %v51, %v54
    %v56 = vsel %vm55, 1, 0
    %v57 = vcvt.s32.f32 %v56
    %v58 = vld [vmem:[%s4] sm:$0xff]
    %v59 = vld [vmem:[%s4 + $0x8] sm:$0xff]
    %vm60 = vcmask 64512
    %v62 = vsel %vm60, %v57, 0
    %64 = vmatprep.subr.mxu0 %v59
    %65 = vmatpush1.msra.mxu0 %v58
    %66 = vmatprep.subr.mxu0 0.0
    %67 = vmatpush1.msra.mxu0 0.0
    %68 = vmatprep.subr.mxu0 0.0
    %69 = vmatpush1.msra.mxu0 0.0
    %70 = vmatprep.subr.mxu0 0.0
    %71 = vmatpush1.msra.mxu0 0.0
    %72 = vmatprep.subr.mxu0 0.0
    %73 = vmatpush1.msra.mxu0 0.0
    %74 = vmatprep.subr.mxu0 0.0
    %75 = vmatpush1.msra.mxu0 0.0
    %76 = vmatprep.subr.mxu0 0.0
    %77 = vmatpush1.msra.mxu0 0.0
    %78 = vmatprep.subr.mxu0 0.0
    %79 = vmatpush1.msra.mxu0 0.0
    %80 = vmatprep.subr.mxu0 0.0
    %81 = vmatpush1.msra.mxu0 0.0
    %82 = vmatprep.subr.mxu0 0.0
    %83 = vmatpush1.msra.mxu0 0.0
    %84 = vmatprep.subr.mxu0 0.0
    %85 = vmatpush1.msra.mxu0 0.0
    %86 = vmatprep.subr.mxu0 0.0
    %87 = vmatpush1.msra.mxu0 0.0
    %88 = vmatprep.subr.mxu0 0.0
    %89 = vmatpush1.msra.mxu0 0.0
    %90 = vmatprep.subr.mxu0 0.0
    %91 = vmatpush1.msra.mxu0 0.0
    %92 = vmatprep.subr.mxu0 0.0
    %93 = vmatpush1.msra.mxu0 0.0
    %94 = vmatprep.subr.mxu0 0.0
    %95 = vmatpush1.msra.mxu0 0.0
    %96 = vmatprep.subr.mxu0 0.0
    %97 = vmatpush1.msra.mxu0 0.0
    %98 = vmatprep.subr.mxu0 0.0
    %99 = vmatpush1.msra.mxu0 0.0
    %100 = vmatprep.subr.mxu0 0.0
    %101 = vmatpush1.msra.mxu0 0.0
    %102 = vmatprep.subr.mxu0 0.0
    %103 = vmatpush1.msra.mxu0 0.0
    %104 = vmatprep.subr.mxu0 0.0
    %105 = vmatpush1.msra.mxu0 0.0
    %106 = vmatprep.subr.mxu0 0.0
    %107 = vmatpush1.msra.mxu0 0.0
    %108 = vmatprep.subr.mxu0 0.0
    %109 = vmatpush1.msra.mxu0 0.0
    %110 = vmatprep.subr.mxu0 0.0
    %111 = vmatpush1.msra.mxu0 0.0
    %112 = vmatprep.subr.mxu0 0.0
    %113 = vmatpush1.msra.mxu0 0.0
    %114 = vmatprep.subr.mxu0 0.0
    %115 = vmatpush1.msra.mxu0 0.0
    %116 = vmatprep.subr.mxu0 0.0
    %117 = vmatpush1.msra.mxu0 0.0
    %118 = vmatprep.subr.mxu0 0.0
    %119 = vmatpush1.msra.mxu0 0.0
    %120 = vmatprep.subr.mxu0 0.0
    %121 = vmatpush1.msra.mxu0 0.0
    %122 = vmatprep.subr.mxu0 0.0
    %123 = vmatpush1.msra.mxu0 0.0
    %124 = vmatprep.subr.mxu0 0.0
    %125 = vmatpush1.msra.mxu0 0.0
    %126 = vmatprep.subr.mxu0 0.0
    %127 = vmatpush1.msra.mxu0 0.0
    %128 = vmatprep.mubr.f32.mxu0 0.0
    %129 = vmatmul.mubr.f32.gmra.mrb[0].mxu0 %v62
    %v130 = vpop.f32.mrb[0].mxu0
    %v131 = vadd.f32 0.0, %v130
    %v132 = vpop.f32.mrb[0].mxu0
    %v133 = vadd.f32 0.0, %v132
    %134 = vdwg.mxu0
    %v135 = vld [vmem:[%s5] sm:$0xff]
    %v136 = vld [vmem:[%s5 + $0x8] sm:$0xff]
    %v137 = vld [vmem:[%s5 + $0x10] sm:$0xff]
    %v138 = vld [vmem:[%s5 + $0x18] sm:$0xff]
    %v139 = vld [vmem:[%s5 + $0x20] sm:$0xff]
    %v140 = vld [vmem:[%s5 + $0x28] sm:$0xff]
    %v141 = vld [vmem:[%s5 + $0x30] sm:$0xff]
    %v142 = vld [vmem:[%s5 + $0x38] sm:$0xff]
    %v143 = vld [vmem:[%s5 + $0x40] sm:$0x1]
    %vm144 = vcmask 261120
    %v146 = vsel %vm144, %v45, 0
    %v149 = vsel %vm144, %v46, 0
    %151 = vmatprep.subr.mxu0 0.0
    %152 = vmatpush1.msra.mxu0 %v135
    %153 = vmatprep.subr.mxu0 0.0
    %154 = vmatpush1.msra.mxu0 %v136
    %155 = vmatprep.subr.mxu0 0.0
    %156 = vmatpush1.msra.mxu0 %v137
    %157 = vmatprep.subr.mxu0 0.0
    %158 = vmatpush1.msra.mxu0 %v138
    %159 = vmatprep.subr.mxu0 0.0
    %160 = vmatpush1.msra.mxu0 0.0
    %161 = vmatprep.subr.mxu0 0.0
    %162 = vmatpush1.msra.mxu0 0.0
    %163 = vmatprep.subr.mxu0 0.0
    %164 = vmatpush1.msra.mxu0 0.0
    %165 = vmatprep.subr.mxu0 0.0
    %166 = vmatpush1.msra.mxu0 0.0
    %167 = vmatprep.subr.mxu0 0.0
    %168 = vmatpush1.msra.mxu0 0.0
    %169 = vmatprep.subr.mxu0 0.0
    %170 = vmatpush1.msra.mxu0 0.0
    %171 = vmatprep.subr.mxu0 0.0
    %172 = vmatpush1.msra.mxu0 0.0
    %173 = vmatprep.subr.mxu0 0.0
    %174 = vmatpush1.msra.mxu0 0.0
    %175 = vmatprep.subr.mxu0 0.0
    %176 = vmatpush1.msra.mxu0 0.0
    %177 = vmatprep.subr.mxu0 0.0
    %178 = vmatpush1.msra.mxu0 0.0
    %179 = vmatprep.subr.mxu0 0.0
    %180 = vmatpush1.msra.mxu0 0.0
    %181 = vmatprep.subr.mxu0 0.0
    %182 = vmatpush1.msra.mxu0 0.0
    %183 = vmatprep.subr.mxu0 0.0
    %184 = vmatpush1.msra.mxu0 0.0
    %185 = vmatprep.subr.mxu0 0.0
    %186 = vmatpush1.msra.mxu0 0.0
    %187 = vmatprep.subr.mxu0 0.0
    %188 = vmatpush1.msra.mxu0 0.0
    %189 = vmatprep.subr.mxu0 0.0
    %190 = vmatpush1.msra.mxu0 0.0
    %191 = vmatprep.subr.mxu0 0.0
    %192 = vmatpush1.msra.mxu0 0.0
    %193 = vmatprep.subr.mxu0 0.0
    %194 = vmatpush1.msra.mxu0 0.0
    %195 = vmatprep.subr.mxu0 0.0
    %196 = vmatpush1.msra.mxu0 0.0
    %197 = vmatprep.subr.mxu0 0.0
    %198 = vmatpush1.msra.mxu0 0.0
    %199 = vmatprep.subr.mxu0 0.0
    %200 = vmatpush1.msra.mxu0 0.0
    %201 = vmatprep.subr.mxu0 0.0
    %202 = vmatpush1.msra.mxu0 0.0
    %203 = vmatprep.subr.mxu0 0.0
    %204 = vmatpush1.msra.mxu0 0.0
    %205 = vmatprep.subr.mxu0 0.0
    %206 = vmatpush1.msra.mxu0 0.0
    %207 = vmatprep.subr.mxu0 0.0
    %208 = vmatpush1.msra.mxu0 0.0
    %209 = vmatprep.subr.mxu0 0.0
    %210 = vmatpush1.msra.mxu0 0.0
    %211 = vmatprep.subr.mxu0 0.0
    %212 = vmatpush1.msra.mxu0 0.0
    %213 = vmatprep.subr.mxu0 0.0
    %214 = vmatpush1.msra.mxu0 0.0
    %215 = vmatprep.mubr.f32.mxu0 0.0
    %216 = vmatmul.mubr.f32.gmra.mrb[0].mxu0 %v146
    %v217 = vpop.f32.mrb[0].mxu0
    %v218 = vadd.f32 0.0, %v217
    %v219 = vpop.f32.mrb[0].mxu0
    %220 = vmatprep.mubr.f32.mxu0 0.0
    %221 = vmatmul.mubr.f32.gmra.mrb[0].mxu0 %v149
    %v222 = vpop.f32.mrb[0].mxu0
    %v223 = vadd.f32 0.0, %v222
    %v224 = vpop.f32.mrb[0].mxu0
    %225 = vdwg.mxu0
    %v227 = vsel %vm144, %v47, 0
    %229 = vmatprep.subr.mxu0 0.0
    %230 = vmatpush1.msra.mxu0 %v139
    %231 = vmatprep.subr.mxu0 0.0
    %232 = vmatpush1.msra.mxu0 %v140
    %233 = vmatprep.subr.mxu0 0.0
    %234 = vmatpush1.msra.mxu0 %v141
    %235 = vmatprep.subr.mxu0 0.0
    %236 = vmatpush1.msra.mxu0 %v142
    %237 = vmatprep.subr.mxu0 0.0
    %238 = vmatpush1.msra.mxu0 0.0
    %239 = vmatprep.subr.mxu0 0.0
    %240 = vmatpush1.msra.mxu0 0.0
    %241 = vmatprep.subr.mxu0 0.0
    %242 = vmatpush1.msra.mxu0 0.0
    %243 = vmatprep.subr.mxu0 0.0
    %244 = vmatpush1.msra.mxu0 0.0
    %245 = vmatprep.subr.mxu0 0.0
    %246 = vmatpush1.msra.mxu0 0.0
    %247 = vmatprep.subr.mxu0 0.0
    %248 = vmatpush1.msra.mxu0 0.0
    %249 = vmatprep.subr.mxu0 0.0
    %250 = vmatpush1.msra.mxu0 0.0
    %251 = vmatprep.subr.mxu0 0.0
    %252 = vmatpush1.msra.mxu0 0.0
    %253 = vmatprep.subr.mxu0 0.0
    %254 = vmatpush1.msra.mxu0 0.0
    %255 = vmatprep.subr.mxu0 0.0
    %256 = vmatpush1.msra.mxu0 0.0
    %257 = vmatprep.subr.mxu0 0.0
    %258 = vmatpush1.msra.mxu0 0.0
    %259 = vmatprep.subr.mxu0 0.0
    %260 = vmatpush1.msra.mxu0 0.0
    %261 = vmatprep.subr.mxu0 0.0
    %262 = vmatpush1.msra.mxu0 0.0
    %263 = vmatprep.subr.mxu0 0.0
    %264 = vmatpush1.msra.mxu0 0.0
    %265 = vmatprep.subr.mxu0 0.0
    %266 = vmatpush1.msra.mxu0 0.0
    %267 = vmatprep.subr.mxu0 0.0
    %268 = vmatpush1.msra.mxu0 0.0
    %269 = vmatprep.subr.mxu0 0.0
    %270 = vmatpush1.msra.mxu0 0.0
    %271 = vmatprep.subr.mxu0 0.0
    %272 = vmatpush1.msra.mxu0 0.0
    %273 = vmatprep.subr.mxu0 0.0
    %274 = vmatpush1.msra.mxu0 0.0
    %275 = vmatprep.subr.mxu0 0.0
    %276 = vmatpush1.msra.mxu0 0.0
    %277 = vmatprep.subr.mxu0 0.0
    %278 = vmatpush1.msra.mxu0 0.0
    %279 = vmatprep.subr.mxu0 0.0
    %280 = vmatpush1.msra.mxu0 0.0
    %281 = vmatprep.subr.mxu0 0.0
    %282 = vmatpush1.msra.mxu0 0.0
    %283 = vmatprep.subr.mxu0 0.0
    %284 = vmatpush1.msra.mxu0 0.0
    %285 = vmatprep.subr.mxu0 0.0
    %286 = vmatpush1.msra.mxu0 0.0
    %287 = vmatprep.subr.mxu0 0.0
    %288 = vmatpush1.msra.mxu0 0.0
    %289 = vmatprep.subr.mxu0 0.0
    %290 = vmatpush1.msra.mxu0 0.0
    %291 = vmatprep.subr.mxu0 0.0
    %292 = vmatpush1.msra.mxu0 0.0
    %293 = vmatprep.mubr.f32.mxu0 0.0
    %294 = vmatmul.mubr.f32.gmra.mrb[0].mxu0 %v227
    %v295 = vpop.f32.mrb[0].mxu0
    %v296 = vadd.f32 0.0, %v295
    %v297 = vpop.f32.mrb[0].mxu0
    %298 = vdwg.mxu0
    %v301 = vunpack.c.l.s4 1966171168
    %v302 = vunpack.c.0.s8 %v301
    %v303 = vlaneseq
    %v304 = vshrl.u32 %v303, 7
    %v305 = vsub.s32 %v302, %v304
    %v306 = vrot.slane %v296, %v305
    %v307 = vcombine.high %v306, %v306
    %v309 = vunpack.c.l.s4 1966171168
    %v310 = vunpack.c.0.s8 %v309
    %v311 = vlaneseq
    %v312 = vshrl.u32 %v311, 7
    %v313 = vsub.s32 %v310, %v312
    %v314 = vrot.slane %v306, %v313
    %v316 = vunpack.c.l.s4 1966171168
    %v317 = vunpack.c.0.s8 %v316
    %v318 = vlaneseq
    %v319 = vshrl.u32 %v318, 7
    %v320 = vsub.s32 %v317, %v319
    %v321 = vrot.slane %v307, %v320
    %v322 = vlaneseq
    %v323 = vshrl.u32 %v322, 7
    %v324 = vsub.s32 0, %v323
    %v325 = vrot.slane %v314, %v324
    %v326 = vlaneseq
    %v327 = vshrl.u32 %v326, 7
    %v328 = vsub.s32 0, %v327
    %v329 = vrot.slane %v321, %v328
    %v332 = vadd.f32 %v218, %v325
    %v333 = vadd.f32 %v223, %v329
    %v334 = vtanh.pop %v332
    %v335 = vtanh.pop %v333
    %v336 = vlaneseq
    %v337 = vshrl.u32 %v336, 7
    %v338 = vsub.s32 0, %v337
    %v339 = vrot.slane %v143, %v338
    %v340 = vmul.f32 %v334, %v339
    %v341 = vmul.f32 %v335, %v339
    %vm342 = vcmask 523264
    %v343 = vsel %vm342, %v340, 0.0
    %344 = vadd.xlane.f32.xlu0 %v343
    %v345 = vpop.xlane.xlu0 %344
    %v346 = vsel %vm342, %v341, 0.0
    %347 = vadd.xlane.f32.xlu0 %v346
    %v348 = vpop.xlane.xlu0 %347
    %v351 = vlaneseq
    %v352 = vshrl.u32 %v351, 7
    %v353 = vsub.s32 %v51, %v352
    %v354 = vrot.slane %v345, %v353
    %v355 = vlaneseq
    %v356 = vshrl.u32 %v355, 7
    %v357 = vsub.s32 %v51, %v356
    %v358 = vrot.slane %v348, %v357
    %vm359 = vcmask 1041409
    %v360 = vsel %vm359, %v358, %v354
    %vm362 = vcmask 58368
    %v363 = vsel %vm362, %v360, -inf
    %364 = vmax.xlane.f32.xlu0 %v363
    %v365 = vpop.xlane.xlu0 %364
    %v367 = vlaneseq
    %v368 = vshrl.u32 %v367, 7
    %v369 = vsub.s32 0, %v368
    %v370 = vrot.slane %v365, %v369
    %v371 = vlaneseq
    %v372 = vshrl.u32 %v371, 7
    %v373 = vsub.s32 1, %v372
    %v374 = vrot.slane %v365, %v373
    %v377 = vsub.f32 %v345, %v370
    %v378 = vsub.f32 %v348, %v374
    %v379 = vmul.f32 %v377, 1.442695
    %v380 = vpow.pop %v379
    %v381 = vmul.f32 %v378, 1.442695
    %v382 = vpow.pop %v381
    %385 = vset.pattern.permute.xlu0 0
    %386 = vperm.xlu0 %385, %v380
    %v387 = vpop.permute.xlu0 %386
    %388 = vset.pattern.permute.xlu0 0
    %389 = vperm.xlu0 %388, %v382
    %v390 = vpop.permute.xlu0 %389
    %v391 = vlaneseq
    %v392 = vshrl.u32 %v391, 7
    %v393 = vsub.s32 %v51, %v392
    %v394 = vrot.slane %v387, %v393
    %v395 = vlaneseq
    %v396 = vshrl.u32 %v395, 7
    %v397 = vsub.s32 %v51, %v396
    %v398 = vrot.slane %v390, %v397
    %v399 = vsel %vm359, %v398, %v394
    %v401 = vsel %vm362, %v399, 0.0
    %402 = vadd.xlane.f32.xlu0 %v401
    %v403 = vpop.xlane.xlu0 %402
    %v404 = vrcp.pop %v403
    %v406 = vlaneseq
    %v407 = vshrl.u32 %v406, 7
    %v408 = vsub.s32 0, %v407
    %v409 = vrot.slane %v404, %v408
    %v410 = vlaneseq
    %v411 = vshrl.u32 %v410, 7
    %v412 = vsub.s32 1, %v411
    %v413 = vrot.slane %v404, %v412
    %v416 = vmul.f32 %v380, %v409
    %v417 = vmul.f32 %v382, %v413
    %419 = vset.pattern.permute.xlu0 0
    %420 = vperm.xlu0 %419, %v416
    %v421 = vpop.permute.xlu0 %420
    %424 = vset.pattern.permute.xlu0 0
    %425 = vperm.xlu0 %424, %v417
    %v426 = vpop.permute.xlu0 %425
    %v428 = vmul.f32 %v421, %v45
    %v429 = vmul.f32 %v426, %v46
    %v430 = vsel %vm144, %v428, 0.0
    %v431 = vrot.slane %v430, 4
    %v432 = vadd.f32 %v430, %v431
    %v433 = vrot.slane %v432, 2
    %v434 = vadd.f32 %v432, %v433
    %v435 = vrot.slane %v434, 1
    %v436 = vadd.f32 %v434, %v435
    %v437 = vsel %vm144, %v429, 0.0
    %v438 = vrot.slane %v437, 4
    %v439 = vadd.f32 %v437, %v438
    %v440 = vrot.slane %v439, 2
    %v441 = vadd.f32 %v439, %v440
    %v442 = vrot.slane %v441, 1
    %v443 = vadd.f32 %v441, %v442
    %v444 = vld [vmem:[#allocation2] sm:$0xff]
    %v445 = vld [vmem:[#allocation2 + $0x8] sm:$0xff]
    %v446 = vld [vmem:[#allocation2 + $0x10] sm:$0xff]
    %v447 = vld [vmem:[#allocation2 + $0x18] sm:$0xff]
    %v448 = vld [vmem:[#allocation2 + $0x20] sm:$0xff]
    %v449 = vld [vmem:[#allocation2 + $0x28] sm:$0xff]
    %v450 = vld [vmem:[#allocation2 + $0x30] sm:$0xff]
    %v451 = vld [vmem:[#allocation2 + $0x38] sm:$0xff]
    %v452 = vld [vmem:[#allocation2 + $0x40] sm:$0xff]
    %v453 = vld [vmem:[#allocation2 + $0x48] sm:$0xff]
    %v454 = vld [vmem:[#allocation2 + $0x50] sm:$0xff]
    %v455 = vld [vmem:[#allocation2 + $0x58] sm:$0xff]
    %v456 = vld [vmem:[#allocation2 + $0x60] sm:$0xff]
    %v457 = vld [vmem:[#allocation2 + $0x68] sm:$0xff]
    %v458 = vld [vmem:[#allocation2 + $0x70] sm:$0xff]
    %v459 = vld [vmem:[#allocation2 + $0x78] sm:$0xff]
    %v460 = vld [vmem:[#allocation2 + $0x80] sm:$0xff]
    %v461 = vld [vmem:[#allocation2 + $0x88] sm:$0xff]
    %v462 = vld [vmem:[#allocation2 + $0x90] sm:$0xff]
    %v463 = vld [vmem:[#allocation2 + $0x98] sm:$0xff]
    %v464 = vld [vmem:[#allocation2 + $0xa0] sm:$0xff]
    %v465 = vld [vmem:[#allocation2 + $0xa8] sm:$0xff]
    %v466 = vld [vmem:[#allocation2 + $0xb0] sm:$0xff]
    %v467 = vld [vmem:[#allocation2 + $0xb8] sm:$0xff]
    %v468 = vld [vmem:[#allocation2 + $0xc0] sm:$0xff]
    %v469 = vld [vmem:[#allocation2 + $0xc8] sm:$0xff]
    %v470 = vld [vmem:[#allocation2 + $0xd0] sm:$0xff]
    %v471 = vld [vmem:[#allocation2 + $0xd8] sm:$0xff]
    %v472 = vld [vmem:[#allocation2 + $0xe0] sm:$0xff]
    %v473 = vld [vmem:[#allocation2 + $0xe8] sm:$0xff]
    %v474 = vld [vmem:[#allocation2 + $0xf0] sm:$0xff]
    %v475 = vld [vmem:[#allocation2 + $0xf8] sm:$0xff]
    %v476 = vld [vmem:[#allocation2 + $0x100] sm:$0xff]
    %v477 = vld [vmem:[#allocation2 + $0x108] sm:$0xff]
    %v478 = vld [vmem:[#allocation2 + $0x110] sm:$0xff]
    %v479 = vld [vmem:[#allocation2 + $0x118] sm:$0xff]
    %v480 = vld [vmem:[#allocation2 + $0x120] sm:$0xff]
    %v481 = vld [vmem:[#allocation2 + $0x128] sm:$0xff]
    %v482 = vld [vmem:[#allocation2 + $0x130] sm:$0xff]
    %v483 = vld [vmem:[#allocation2 + $0x138] sm:$0xff]
    %v484 = vld [vmem:[#allocation2 + $0x140] sm:$0x1]
    %485 = vmatprep.subr.mxu0 0.0
    %486 = vmatpush1.msra.mxu0 %v476
    %487 = vmatprep.subr.mxu0 0.0
    %488 = vmatpush1.msra.mxu0 %v477
    %489 = vmatprep.subr.mxu0 0.0
    %490 = vmatpush1.msra.mxu0 %v478
    %491 = vmatprep.subr.mxu0 0.0
    %492 = vmatpush1.msra.mxu0 %v479
    %493 = vmatprep.subr.mxu0 0.0
    %494 = vmatpush1.msra.mxu0 0.0
    %495 = vmatprep.subr.mxu0 0.0
    %496 = vmatpush1.msra.mxu0 0.0
    %497 = vmatprep.subr.mxu0 0.0
    %498 = vmatpush1.msra.mxu0 0.0
    %499 = vmatprep.subr.mxu0 0.0
    %500 = vmatpush1.msra.mxu0 0.0
    %501 = vmatprep.subr.mxu0 0.0
    %502 = vmatpush1.msra.mxu0 0.0
    %503 = vmatprep.subr.mxu0 0.0
    %504 = vmatpush1.msra.mxu0 0.0
    %505 = vmatprep.subr.mxu0 0.0
    %506 = vmatpush1.msra.mxu0 0.0
    %507 = vmatprep.subr.mxu0 0.0
    %508 = vmatpush1.msra.mxu0 0.0
    %509 = vmatprep.subr.mxu0 0.0
    %510 = vmatpush1.msra.mxu0 0.0
    %511 = vmatprep.subr.mxu0 0.0
    %512 = vmatpush1.msra.mxu0 0.0
    %513 = vmatprep.subr.mxu0 0.0
    %514 = vmatpush1.msra.mxu0 0.0
    %515 = vmatprep.subr.mxu0 0.0
    %516 = vmatpush1.msra.mxu0 0.0
    %517 = vmatprep.subr.mxu0 0.0
    %518 = vmatpush1.msra.mxu0 0.0
    %519 = vmatprep.subr.mxu0 0.0
    %520 = vmatpush1.msra.mxu0 0.0
    %521 = vmatprep.subr.mxu0 0.0
    %522 = vmatpush1.msra.mxu0 0.0
    %523 = vmatprep.subr.mxu0 0.0
    %524 = vmatpush1.msra.mxu0 0.0
    %525 = vmatprep.subr.mxu0 0.0
    %526 = vmatpush1.msra.mxu0 0.0
    %527 = vmatprep.subr.mxu0 0.0
    %528 = vmatpush1.msra.mxu0 0.0
    %529 = vmatprep.subr.mxu0 0.0
    %530 = vmatpush1.msra.mxu0 0.0
    %531 = vmatprep.subr.mxu0 0.0
    %532 = vmatpush1.msra.mxu0 0.0
    %533 = vmatprep.subr.mxu0 0.0
    %534 = vmatpush1.msra.mxu0 0.0
    %535 = vmatprep.subr.mxu0 0.0
    %536 = vmatpush1.msra.mxu0 0.0
    %537 = vmatprep.subr.mxu0 0.0
    %538 = vmatpush1.msra.mxu0 0.0
    %539 = vmatprep.subr.mxu0 0.0
    %540 = vmatpush1.msra.mxu0 0.0
    %541 = vmatprep.subr.mxu0 0.0
    %542 = vmatpush1.msra.mxu0 0.0
    %543 = vmatprep.subr.mxu0 0.0
    %544 = vmatpush1.msra.mxu0 0.0
    %545 = vmatprep.subr.mxu0 0.0
    %546 = vmatpush1.msra.mxu0 0.0
    %547 = vmatprep.subr.mxu0 0.0
    %548 = vmatpush1.msra.mxu0 0.0
    %549 = vmatprep.mubr.f32.mxu0 0.0
    %550 = vmatmul.mubr.f32.gmra.mrb[0].mxu0 %v227
    %v551 = vpop.f32.mrb[0].mxu0
    %v552 = vadd.f32 0.0, %v551
    %v553 = vpop.f32.mrb[0].mxu0
    %554 = vdwg.mxu0
    %555 = vmatprep.subr.mxu0 0.0
    %556 = vmatpush1.msra.mxu0 %v444
    %557 = vmatprep.subr.mxu0 0.0
    %558 = vmatpush1.msra.mxu0 %v445
    %559 = vmatprep.subr.mxu0 0.0
    %560 = vmatpush1.msra.mxu0 %v446
    %561 = vmatprep.subr.mxu0 0.0
    %562 = vmatpush1.msra.mxu0 %v447
    %563 = vmatprep.subr.mxu0 0.0
    %564 = vmatpush1.msra.mxu0 %v448
    %565 = vmatprep.subr.mxu0 0.0
    %566 = vmatpush1.msra.mxu0 %v449
    %567 = vmatprep.subr.mxu0 0.0
    %568 = vmatpush1.msra.mxu0 %v450
    %569 = vmatprep.subr.mxu0 0.0
    %570 = vmatpush1.msra.mxu0 %v451
    %571 = vmatprep.subr.mxu0 0.0
    %572 = vmatpush1.msra.mxu0 %v452
    %573 = vmatprep.subr.mxu0 0.0
    %574 = vmatpush1.msra.mxu0 %v453
    %575 = vmatprep.subr.mxu0 0.0
    %576 = vmatpush1.msra.mxu0 %v454
    %577 = vmatprep.subr.mxu0 0.0
    %578 = vmatpush1.msra.mxu0 %v455
    %579 = vmatprep.subr.mxu0 0.0
    %580 = vmatpush1.msra.mxu0 %v456
    %581 = vmatprep.subr.mxu0 0.0
    %582 = vmatpush1.msra.mxu0 %v457
    %583 = vmatprep.subr.mxu0 0.0
    %584 = vmatpush1.msra.mxu0 %v458
    %585 = vmatprep.subr.mxu0 0.0
    %586 = vmatpush1.msra.mxu0 %v459
    %587 = vmatprep.subr.mxu0 0.0
    %588 = vmatpush1.msra.mxu0 %v460
    %589 = vmatprep.subr.mxu0 0.0
    %590 = vmatpush1.msra.mxu0 %v461
    %591 = vmatprep.subr.mxu0 0.0
    %592 = vmatpush1.msra.mxu0 %v462
    %593 = vmatprep.subr.mxu0 0.0
    %594 = vmatpush1.msra.mxu0 %v463
    %595 = vmatprep.subr.mxu0 0.0
    %596 = vmatpush1.msra.mxu0 %v464
    %597 = vmatprep.subr.mxu0 0.0
    %598 = vmatpush1.msra.mxu0 %v465
    %599 = vmatprep.subr.mxu0 0.0
    %600 = vmatpush1.msra.mxu0 %v466
    %601 = vmatprep.subr.mxu0 0.0
    %602 = vmatpush1.msra.mxu0 %v467
    %603 = vmatprep.subr.mxu0 0.0
    %604 = vmatpush1.msra.mxu0 %v468
    %605 = vmatprep.subr.mxu0 0.0
    %606 = vmatpush1.msra.mxu0 %v469
    %607 = vmatprep.subr.mxu0 0.0
    %608 = vmatpush1.msra.mxu0 %v470
    %609 = vmatprep.subr.mxu0 0.0
    %610 = vmatpush1.msra.mxu0 %v471
    %611 = vmatprep.subr.mxu0 0.0
    %612 = vmatpush1.msra.mxu0 %v472
    %613 = vmatprep.subr.mxu0 0.0
    %614 = vmatpush1.msra.mxu0 %v473
    %615 = vmatprep.subr.mxu0 0.0
    %616 = vmatpush1.msra.mxu0 %v474
    %617 = vmatprep.subr.mxu0 0.0
    %618 = vmatpush1.msra.mxu0 %v475
    %619 = vmatprep.mubr.f32.mxu0 %v133
    %620 = vmatmul.mubr.f32.gmra.mrb[0].mxu0 %v131
    %v621 = vpop.f32.mrb[0].mxu0
    %v622 = vadd.f32 %v552, %v621
    %v623 = vpop.f32.mrb[0].mxu0
    %624 = vdwg.mxu0
    %v627 = vsel %vm359, %v443, %v436
    %v628 = vsel %vm144, %v627, 0
    %630 = vmatprep.subr.mxu0 0.0
    %631 = vmatpush1.msra.mxu0 %v480
    %632 = vmatprep.subr.mxu0 0.0
    %633 = vmatpush1.msra.mxu0 %v481
    %634 = vmatprep.subr.mxu0 0.0
    %635 = vmatpush1.msra.mxu0 %v482
    %636 = vmatprep.subr.mxu0 0.0
    %637 = vmatpush1.msra.mxu0 %v483
    %638 = vmatprep.subr.mxu0 0.0
    %639 = vmatpush1.msra.mxu0 0.0
    %640 = vmatprep.subr.mxu0 0.0
    %641 = vmatpush1.msra.mxu0 0.0
    %642 = vmatprep.subr.mxu0 0.0
    %643 = vmatpush1.msra.mxu0 0.0
    %644 = vmatprep.subr.mxu0 0.0
    %645 = vmatpush1.msra.mxu0 0.0
    %646 = vmatprep.subr.mxu0 0.0
    %647 = vmatpush1.msra.mxu0 0.0
    %648 = vmatprep.subr.mxu0 0.0
    %649 = vmatpush1.msra.mxu0 0.0
    %650 = vmatprep.subr.mxu0 0.0
    %651 = vmatpush1.msra.mxu0 0.0
    %652 = vmatprep.subr.mxu0 0.0
    %653 = vmatpush1.msra.mxu0 0.0
    %654 = vmatprep.subr.mxu0 0.0
    %655 = vmatpush1.msra.mxu0 0.0
    %656 = vmatprep.subr.mxu0 0.0
    %657 = vmatpush1.msra.mxu0 0.0
    %658 = vmatprep.subr.mxu0 0.0
    %659 = vmatpush1.msra.mxu0 0.0
    %660 = vmatprep.subr.mxu0 0.0
    %661 = vmatpush1.msra.mxu0 0.0
    %662 = vmatprep.subr.mxu0 0.0
    %663 = vmatpush1.msra.mxu0 0.0
    %664 = vmatprep.subr.mxu0 0.0
    %665 = vmatpush1.msra.mxu0 0.0
    %666 = vmatprep.subr.mxu0 0.0
    %667 = vmatpush1.msra.mxu0 0.0
    %668 = vmatprep.subr.mxu0 0.0
    %669 = vmatpush1.msra.mxu0 0.0
    %670 = vmatprep.subr.mxu0 0.0
    %671 = vmatpush1.msra.mxu0 0.0
    %672 = vmatprep.subr.mxu0 0.0
    %673 = vmatpush1.msra.mxu0 0.0
    %674 = vmatprep.subr.mxu0 0.0
    %675 = vmatpush1.msra.mxu0 0.0
    %676 = vmatprep.subr.mxu0 0.0
    %677 = vmatpush1.msra.mxu0 0.0
    %678 = vmatprep.subr.mxu0 0.0
    %679 = vmatpush1.msra.mxu0 0.0
    %680 = vmatprep.subr.mxu0 0.0
    %681 = vmatpush1.msra.mxu0 0.0
    %682 = vmatprep.subr.mxu0 0.0
    %683 = vmatpush1.msra.mxu0 0.0
    %684 = vmatprep.subr.mxu0 0.0
    %685 = vmatpush1.msra.mxu0 0.0
    %686 = vmatprep.subr.mxu0 0.0
    %687 = vmatpush1.msra.mxu0 0.0
    %688 = vmatprep.subr.mxu0 0.0
    %689 = vmatpush1.msra.mxu0 0.0
    %690 = vmatprep.subr.mxu0 0.0
    %691 = vmatpush1.msra.mxu0 0.0
    %692 = vmatprep.subr.mxu0 0.0
    %693 = vmatpush1.msra.mxu0 0.0
    %694 = vmatprep.mubr.f32.mxu0 0.0
    %695 = vmatmul.mubr.f32.gmra.mrb[0].mxu0 %v628
    %v696 = vpop.f32.mrb[0].mxu0
    %v697 = vadd.f32 0.0, %v696
    %v698 = vpop.f32.mrb[0].mxu0
    %699 = vdwg.mxu0
    %v700 = vadd.f32 %v622, %v697
    %v701 = vlaneseq
    %v702 = vshrl.u32 %v701, 7
    %v703 = vsub.s32 0, %v702
    %v704 = vrot.slane %v484, %v703
    %v705 = vadd.f32 %v700, %v704
    %v706 = vxor.u32 %v705, 2147483648
    %v707 = vmul.f32 %v706, 1.442695
    %v708 = vpow.pop %v707
    %v709 = vadd.f32 %v708, 1.0
    %v710 = vrcp.pop %v709
    %v711 = vmul.f32 1.0, %v710
    %v712 = vtanh.pop %v705
    %714 = vrot.lane.b32.xlu0 %v48, 32
    %v715 = vpop.permute.xlu0 %714
    %v717 = vmul.f32 %v711, %v715
    %719 = vrot.lane.b32.xlu0 %v712, 32
    %v720 = vpop.permute.xlu0 %719
    %v722 = vmul.f32 %v711, %v720
    %724 = vrot.lane.b32.xlu0 %v722, 32
    %v725 = vpop.permute.xlu0 %724
    %v727 = vadd.f32 %v717, %v725
    %v728 = vtanh.pop %v727
    %730 = vrot.lane.b32.xlu0 %v728, 32
    %v731 = vpop.permute.xlu0 %730
    %v733 = vmul.f32 %v711, %v731
    %v734 = vld [vmem:[#allocation2 + $0x148] sm:$0xff]
    %v735 = vld [vmem:[#allocation2 + $0x150] sm:$0xff]
    %v736 = vld [vmem:[#allocation2 + $0x158] sm:$0xff]
    %v737 = vld [vmem:[#allocation2 + $0x160] sm:$0xff]
    %v738 = vld [vmem:[#allocation2 + $0x168] sm:$0x1]
    %v739 = vlaneseq
    %v740 = vshrl.u32 %v739, 7
    %v741 = vsub.s32 0, %v740
    %v742 = vrot.slane %v738, %v741
    %744 = vrot.lane.b32.xlu0 %v733, 64
    %v745 = vpop.permute.xlu0 %744
    %v746 = vsel %vm144, %v745, 0
    %748 = vmatprep.subr.mxu0 0.0
    %749 = vmatpush1.msra.mxu0 %v734
    %750 = vmatprep.subr.mxu0 0.0
    %751 = vmatpush1.msra.mxu0 %v735
    %752 = vmatprep.subr.mxu0 0.0
    %753 = vmatpush1.msra.mxu0 %v736
    %754 = vmatprep.subr.mxu0 0.0
    %755 = vmatpush1.msra.mxu0 %v737
    %756 = vmatprep.subr.mxu0 0.0
    %757 = vmatpush1.msra.mxu0 0.0
    %758 = vmatprep.subr.mxu0 0.0
    %759 = vmatpush1.msra.mxu0 0.0
    %760 = vmatprep.subr.mxu0 0.0
    %761 = vmatpush1.msra.mxu0 0.0
    %762 = vmatprep.subr.mxu0 0.0
    %763 = vmatpush1.msra.mxu0 0.0
    %764 = vmatprep.subr.mxu0 0.0
    %765 = vmatpush1.msra.mxu0 0.0
    %766 = vmatprep.subr.mxu0 0.0
    %767 = vmatpush1.msra.mxu0 0.0
    %768 = vmatprep.subr.mxu0 0.0
    %769 = vmatpush1.msra.mxu0 0.0
    %770 = vmatprep.subr.mxu0 0.0
    %771 = vmatpush1.msra.mxu0 0.0
    %772 = vmatprep.subr.mxu0 0.0
    %773 = vmatpush1.msra.mxu0 0.0
    %774 = vmatprep.subr.mxu0 0.0
    %775 = vmatpush1.msra.mxu0 0.0
    %776 = vmatprep.subr.mxu0 0.0
    %777 = vmatpush1.msra.mxu0 0.0
    %778 = vmatprep.subr.mxu0 0.0
    %779 = vmatpush1.msra.mxu0 0.0
    %780 = vmatprep.subr.mxu0 0.0
    %781 = vmatpush1.msra.mxu0 0.0
    %782 = vmatprep.subr.mxu0 0.0
    %783 = vmatpush1.msra.mxu0 0.0
    %784 = vmatprep.subr.mxu0 0.0
    %785 = vmatpush1.msra.mxu0 0.0
    %786 = vmatprep.subr.mxu0 0.0
    %787 = vmatpush1.msra.mxu0 0.0
    %788 = vmatprep.subr.mxu0 0.0
    %789 = vmatpush1.msra.mxu0 0.0
    %790 = vmatprep.subr.mxu0 0.0
    %791 = vmatpush1.msra.mxu0 0.0
    %792 = vmatprep.subr.mxu0 0.0
    %793 = vmatpush1.msra.mxu0 0.0
    %794 = vmatprep.subr.mxu0 0.0
    %795 = vmatpush1.msra.mxu0 0.0
    %796 = vmatprep.subr.mxu0 0.0
    %797 = vmatpush1.msra.mxu0 0.0
    %798 = vmatprep.subr.mxu0 0.0
    %799 = vmatpush1.msra.mxu0 0.0
    %800 = vmatprep.subr.mxu0 0.0
    %801 = vmatpush1.msra.mxu0 0.0
    %802 = vmatprep.subr.mxu0 0.0
    %803 = vmatpush1.msra.mxu0 0.0
    %804 = vmatprep.subr.mxu0 0.0
    %805 = vmatpush1.msra.mxu0 0.0
    %806 = vmatprep.subr.mxu0 0.0
    %807 = vmatpush1.msra.mxu0 0.0
    %808 = vmatprep.subr.mxu0 0.0
    %809 = vmatpush1.msra.mxu0 0.0
    %810 = vmatprep.subr.mxu0 0.0
    %811 = vmatpush1.msra.mxu0 0.0
    %812 = vmatprep.mubr.f32.mxu0 0.0
    %813 = vmatmul.mubr.f32.gmra.mrb[0].mxu0 %v746
    %v814 = vpop.f32.mrb[0].mxu0
    %v815 = vadd.f32 %v742, %v814
    %v816 = vpop.f32.mrb[0].mxu0
    %817 = vdwg.mxu0
    %v820 = vunpack.c.l.s4 1966171168
    %v821 = vunpack.c.0.s8 %v820
    %v822 = vlaneseq
    %v823 = vshrl.u32 %v822, 7
    %v824 = vsub.s32 %v821, %v823
    %v825 = vrot.slane %v815, %v824
    %v826 = vcombine.high %v825, %v825
    %v828 = vunpack.c.l.s4 1966171168
    %v829 = vunpack.c.0.s8 %v828
    %v830 = vlaneseq
    %v831 = vshrl.u32 %v830, 7
    %v832 = vsub.s32 %v829, %v831
    %v833 = vrot.slane %v825, %v832
    %v835 = vunpack.c.l.s4 1966171168
    %v836 = vunpack.c.0.s8 %v835
    %v837 = vlaneseq
    %v838 = vshrl.u32 %v837, 7
    %v839 = vsub.s32 %v836, %v838
    %v840 = vrot.slane %v826, %v839
    %vm843 = vcmask 24576
    %844 = vst.msk [vmem:[#allocation5] sm:$0x1] %vm843, %v833
    %845 = vst.msk [vmem:[#allocation5 + $0x1] sm:$0x1] %vm843, %v840
    %vm847 = vcmask 254976
    %848 = vst.msk [vmem:[#allocation6] sm:$0x3] %vm847, %v745
    %850 = vrot.lane.b32.xlu0 %v727, 96
    %v851 = vpop.permute.xlu0 %850
    %853 = vst.msk [vmem:[#allocation8] sm:$0x3] %vm847, %v851
    // Predicated region
    $region34: #{attention_decoder_forward.1} parent=1 // pred_check
      _
    $region35: #{attention_decoder_forward.1} parent=1 // pred_check_branch
      %855 = sbr.rel (0) target = $region37
    $region36: #{attention_decoder_forward.1} parent=1 // pred_region
      %s857 = ssub.s32 32, 32
      %858 = vsyncadd [#allocation4], %s857
      %s859 = sshll.u32 [#allocation5], 4
      %s860 = int_to_ptr.vmem [resolvable:$true] %s859
      %865 = dma.vmem_to_hbm [thread:$0]  %s860, 32, %s7, [#allocation4], 16, 16, 1
    $region37: #{attention_decoder_forward.1} parent=1 // pred_fallthru
      _
    // Predicated region
    $region38: #{attention_decoder_forward.1} parent=1 // pred_check
      _
    $region39: #{attention_decoder_forward.1} parent=1 // pred_check_branch
      %867 = sbr.rel (0) target = $region41
    $region40: #{attention_decoder_forward.1} parent=1 // pred_region
      %s869 = ssub.s32 32, 32
      %870 = vsyncadd [#allocation7], %s869
      %s872 = sshll.u32 [#allocation6], 4
      %s873 = int_to_ptr.vmem [resolvable:$true] %s872
      %875 = dma.vmem_to_hbm [thread:$0]  %s873, 32, %s8, [#allocation7]
    $region41: #{attention_decoder_forward.1} parent=1 // pred_fallthru
      _
    // Predicated region
    $region42: #{attention_decoder_forward.1} parent=1 // pred_check
      _
    $region43: #{attention_decoder_forward.1} parent=1 // pred_check_branch
      %877 = sbr.rel (0) target = $region45
    $region44: #{attention_decoder_forward.1} parent=1 // pred_region
      %s879 = ssub.s32 32, 32
      %880 = vsyncadd [#allocation7], %s879
      %s882 = sshll.u32 [#allocation8], 4
      %s883 = int_to_ptr.vmem [resolvable:$true] %s882
      %885 = dma.vmem_to_hbm [thread:$0]  %s883, 32, %s9, [#allocation7]
    $region45: #{attention_decoder_forward.1} parent=1 // pred_fallthru
      _
    // Predicated region
    $region46: #{attention_decoder_forward.1} parent=1 // pred_check
      _
    $region47: #{attention_decoder_forward.1} parent=1 // pred_check_branch
      %887 = sbr.rel (0) target = $region49
    $region48: #{attention_decoder_forward.1} parent=1 // pred_region
      %888 = dma.done [#allocation4], 32
    $region49: #{attention_decoder_forward.1} parent=1 // pred_fallthru
      _
    // Predicated region
    $region50: #{attention_decoder_forward.1} parent=1 // pred_check
      _
    $region51: #{attention_decoder_forward.1} parent=1 // pred_check_branch
      %890 = sbr.rel (0) target = $region53
    $region52: #{attention_decoder_forward.1} parent=1 // pred_region
      %891 = dma.done [#allocation7], 32
    $region53: #{attention_decoder_forward.1} parent=1 // pred_fallthru
      _
    // Predicated region
    $region54: #{attention_decoder_forward.1} parent=1 // pred_check
      _
    $region55: #{attention_decoder_forward.1} parent=1 // pred_check_branch
      %893 = sbr.rel (0) target = $region57
    $region56: #{attention_decoder_forward.1} parent=1 // pred_region
      %894 = dma.done [#allocation7], 32
    $region57: #{attention_decoder_forward.1} parent=1 // pred_fallthru
      _
    %895 = vsyncpa [#allocation3], 1
    %896 = vsyncpa [#allocation4], 1
    %897 = vsyncpa [#allocation7], 1

</llo_original>
